<compile_context>
chip_gen: v7x
topology: tpu7x:2x2x1
jax: 0.10.0
libtpu: 0.0.40
codegen_flags: <defaults>
</compile_context>

<pallas_src>
import math

import jax
import jax.numpy as jnp
from jax import lax
from jax.experimental import pallas as pl
from jax.experimental.pallas import tpu as pltpu


def complex_linear_kernel(xr_ref, xi_ref, wr_ref, wi_ref, br_ref, bi_ref,
                          yr_ref, yi_ref, acc_r, acc_i):
    k = pl.program_id(2)

    @pl.when(k == 0)
    def _init():
        acc_r[...] = jnp.zeros_like(acc_r)
        acc_i[...] = jnp.zeros_like(acc_i)

    xr = xr_ref[...]          # [tm, tk]
    xi = xi_ref[...]          # [tm, tk]
    wr = wr_ref[...]          # [tn, tk]  (native [out, in] layout)
    wi = wi_ref[...]          # [tn, tk]

    # x @ w.T : contract the last dim of both operands on the MXU with f32 acc.
    dn = (((1,), (1,)), ((), ()))
    acc_r[...] += (
        lax.dot_general(xr, wr, dn, preferred_element_type=jnp.float32)
        - lax.dot_general(xi, wi, dn, preferred_element_type=jnp.float32)
    )
    acc_i[...] += (
        lax.dot_general(xr, wi, dn, preferred_element_type=jnp.float32)
        + lax.dot_general(xi, wr, dn, preferred_element_type=jnp.float32)
    )

    @pl.when(k == pl.num_programs(2) - 1)
    def _finalize():
        yr_ref[...] = (acc_r[...] + br_ref[...]).astype(yr_ref.dtype)
        yi_ref[...] = (acc_i[...] + bi_ref[...]).astype(yi_ref.dtype)


def _round_up(x, m):
    return ((x + m - 1) // m) * m


def complex_linear(xr, xi, Wr, Wi, Br, Bi, *, tm=256, tn=256, tk=512):
    """xr, xi: [B, in]; Wr, Wi: [out, in]; Br, Bi: [out] -> (yr, yi): [B, out]."""
    B, in_f = xr.shape
    out_f = Wr.shape[0]

    # Clamp tiles to the (padded) problem size; keep (8, 128) alignment.
    tm = min(tm, _round_up(B, 8))
    tn = min(tn, _round_up(out_f, 128))
    tk = min(tk, _round_up(in_f, 128))

    Bp = _round_up(B, tm)
    Np = _round_up(out_f, tn)
    Kp = _round_up(in_f, tk)

    # Zero-pad: K-padding adds exact zeros to the accumulation; padded M/N
    # rows/cols are sliced off after the call.
    if (Bp, Kp) != (B, in_f):
        xr = jnp.pad(xr, ((0, Bp - B), (0, Kp - in_f)))
        xi = jnp.pad(xi, ((0, Bp - B), (0, Kp - in_f)))
    if (Np, Kp) != (out_f, in_f):
        Wr = jnp.pad(Wr, ((0, Np - out_f), (0, Kp - in_f)))
        Wi = jnp.pad(Wi, ((0, Np - out_f), (0, Kp - in_f)))
    br2 = jnp.pad(Br, (0, Np - out_f)).reshape(1, Np)
    bi2 = jnp.pad(Bi, (0, Np - out_f)).reshape(1, Np)

    grid = (Bp // tm, Np // tn, Kp // tk)

    itemsize = jnp.dtype(xr.dtype).itemsize
    cost = pl.CostEstimate(
        flops=8 * Bp * Np * Kp,          # 4 real matmuls, 2 flops/MAC each
        transcendentals=0,
        bytes_accessed=(2 * Bp * Kp + 2 * Np * Kp + 2 * Bp * Np + 2 * Np)
        * itemsize,
    )

    yr, yi = pl.pallas_call(
        complex_linear_kernel,
        out_shape=(
            jax.ShapeDtypeStruct((Bp, Np), xr.dtype),
            jax.ShapeDtypeStruct((Bp, Np), xi.dtype),
        ),
        grid_spec=pltpu.PrefetchScalarGridSpec(
            num_scalar_prefetch=0,
            grid=grid,
            in_specs=[
                pl.BlockSpec((tm, tk), lambda i, j, k: (i, k)),   # xr
                pl.BlockSpec((tm, tk), lambda i, j, k: (i, k)),   # xi
                pl.BlockSpec((tn, tk), lambda i, j, k: (j, k)),   # Wr (native [out, in])
                pl.BlockSpec((tn, tk), lambda i, j, k: (j, k)),   # Wi (native [out, in])
                pl.BlockSpec((1, tn), lambda i, j, k: (0, j)),    # Br
                pl.BlockSpec((1, tn), lambda i, j, k: (0, j)),    # Bi
            ],
            out_specs=(
                pl.BlockSpec((tm, tn), lambda i, j, k: (i, j)),
                pl.BlockSpec((tm, tn), lambda i, j, k: (i, j)),
            ),
            scratch_shapes=[
                pltpu.VMEM((tm, tn), jnp.float32),   # acc_r
                pltpu.VMEM((tm, tn), jnp.float32),   # acc_i
            ],
        ),
        compiler_params=pltpu.CompilerParams(
            dimension_semantics=("parallel", "parallel", "arbitrary"),
        ),
        cost_estimate=cost,
    )(xr, xi, Wr, Wi, br2, bi2)

    if (Bp, Np) != (B, out_f):
        yr = yr[:B, :out_f]
        yi = yi[:B, :out_f]
    return yr, yi


def complex_rayleigh_init(key, out_features, in_features, gain=1.0):
    """Deterministic JAX version of complex_rayleigh_init (fanin = in_features)."""
    # TODO(synk): PyTorch version draws rho with np.random.rayleigh (global RNG);
    # here it is reproduced deterministically via inverse-CDF sampling in JAX.
    scale = float(gain) / float(in_features)
    k_theta, k_ray = jax.random.split(key)
    theta = jax.random.uniform(k_theta, (out_features, in_features),
                               minval=-math.pi / 2, maxval=math.pi / 2,
                               dtype=jnp.float32)
    u = jax.random.uniform(k_ray, (out_features, in_features),
                           minval=1e-7, maxval=1.0, dtype=jnp.float32)
    rho = scale * jnp.sqrt(-2.0 * jnp.log(u))          # Rayleigh(scale)
    Wr = rho * jnp.cos(theta)
    Wi = rho * jnp.sin(theta)
    return Wr, Wi


def _reference(xr, xi, Wr, Wi, Br, Bi):
    yr = xr @ Wr.T - xi @ Wi.T + Br
    yi = xr @ Wi.T + xi @ Wr.T + Bi
    return yr, yi


if __name__ == "__main__":
    key = jax.random.PRNGKey(0)

    # --- Test 1: module-sized toy shapes (exercises M/N/K padding path) ---
    B, in_features, out_features = 8, 32, 64
    k_w, k_xr, k_xi, key = jax.random.split(key, 4)

    Wr, Wi = complex_rayleigh_init(k_w, out_features, in_features)
    Br = jnp.zeros((out_features,), jnp.float32)
    Bi = jnp.zeros((out_features,), jnp.float32)
    xr = jax.random.normal(k_xr, (B, in_features), dtype=jnp.float32)
    xi = jax.random.normal(k_xi, (B, in_features), dtype=jnp.float32)

    yr, yi = complex_linear(xr, xi, Wr, Wi, Br, Bi)
    jax.block_until_ready((yr, yi))

    yr_ref, yi_ref = _reference(xr, xi, Wr, Wi, Br, Bi)
    assert jnp.allclose(yr, yr_ref, atol=1e-5, rtol=1e-5)
    assert jnp.allclose(yi, yi_ref, atol=1e-5, rtol=1e-5)

    # --- Test 2: forced small tiles exercising multi-step K accumulation,
    #             bias-on-last-step, and multiple parallel (i, j) tiles ---
    B2, in2, out2 = 16, 384, 256
    k_w2, k_xr2, k_xi2, k_b2, key = jax.random.split(key, 5)
    Wr2, Wi2 = complex_rayleigh_init(k_w2, out2, in2)
    Br2 = jax.random.normal(k_b2, (out2,), dtype=jnp.float32) * 0.1
    Bi2 = -Br2
    xr2 = jax.random.normal(k_xr2, (B2, in2), dtype=jnp.float32)
    xi2 = jax.random.normal(k_xi2, (B2, in2), dtype=jnp.float32)

    yr2, yi2 = complex_linear(xr2, xi2, Wr2, Wi2, Br2, Bi2, tm=8, tn=128, tk=128)
    jax.block_until_ready((yr2, yi2))

    yr2_ref, yi2_ref = _reference(xr2, xi2, Wr2, Wi2, Br2, Bi2)
    assert jnp.allclose(yr2, yr2_ref, atol=1e-4, rtol=1e-4)
    assert jnp.allclose(yi2, yi2_ref, atol=1e-4, rtol=1e-4)

    print("KERNEL_OK")
</pallas_src>

<mosaic_0001>
module attributes {stable_mosaic.version = 11 : i64} {
  func.func @complex_linear_kernel(%arg0: i32, %arg1: i32, %arg2: i32, %arg3: memref<8x128xf32, #tpu.memory_space<vmem>>, %arg4: memref<8x128xf32, #tpu.memory_space<vmem>>, %arg5: memref<128x128xf32, #tpu.memory_space<vmem>>, %arg6: memref<128x128xf32, #tpu.memory_space<vmem>>, %arg7: memref<1x128xf32, #tpu.memory_space<vmem>>, %arg8: memref<1x128xf32, #tpu.memory_space<vmem>>, %arg9: memref<8x128xf32, #tpu.memory_space<vmem>>, %arg10: memref<8x128xf32, #tpu.memory_space<vmem>>, %arg11: memref<8x128xf32, #tpu.memory_space<vmem>>, %arg12: memref<8x128xf32, #tpu.memory_space<vmem>>) attributes {dimension_semantics = [#tpu.dimension_semantics<parallel>, #tpu.dimension_semantics<parallel>, #tpu.dimension_semantics<arbitrary>], iteration_bounds = array<i64: 1, 1, 1>, scalar_prefetch = 0 : i64, scratch_operands = 2 : i64, tpu.core_type = #tpu.core_type<tc>, window_params = [{transform_indices = @transform_0, window_bounds = array<i64: 8, 128>}, {transform_indices = @transform_1, window_bounds = array<i64: 8, 128>}, {transform_indices = @transform_2, window_bounds = array<i64: 128, 128>}, {transform_indices = @transform_3, window_bounds = array<i64: 128, 128>}, {transform_indices = @transform_4, window_bounds = array<i64: 1, 128>}, {transform_indices = @transform_5, window_bounds = array<i64: 1, 128>}, {transform_indices = @transform_6, window_bounds = array<i64: 8, 128>}, {transform_indices = @transform_7, window_bounds = array<i64: 8, 128>}]} {
    %c0_i32 = arith.constant 0 : i32
    %0 = arith.cmpi eq, %arg2, %c0_i32 : i32
    %1 = arith.extui %0 : i1 to i32
    %c0_i32_0 = arith.constant 0 : i32
    %2 = arith.cmpi ne, %1, %c0_i32_0 : i32
    scf.if %2 {
      %cst_21 = arith.constant 0.000000e+00 : f32
      %22 = vector.broadcast %cst_21 : f32 to vector<8x128xf32>
      %c0_22 = arith.constant 0 : index
      %c0_23 = arith.constant 0 : index
      %23 = vector.load %arg11[%c0_22, %c0_23] : memref<8x128xf32, #tpu.memory_space<vmem>>, vector<8x128xf32>
      tpu.vector_store %arg11[%c0_22, %c0_23], %22 {strides = array<i32>} : memref<8x128xf32, #tpu.memory_space<vmem>>, vector<8x128xf32>,
      %cst_24 = arith.constant 0.000000e+00 : f32
      %24 = vector.broadcast %cst_24 : f32 to vector<8x128xf32>
      %c0_25 = arith.constant 0 : index
      %c0_26 = arith.constant 0 : index
      %25 = vector.load %arg12[%c0_25, %c0_26] : memref<8x128xf32, #tpu.memory_space<vmem>>, vector<8x128xf32>
      tpu.vector_store %arg12[%c0_25, %c0_26], %24 {strides = array<i32>} : memref<8x128xf32, #tpu.memory_space<vmem>>, vector<8x128xf32>,
    } else {
    }
    %c0 = arith.constant 0 : index
    %c0_1 = arith.constant 0 : index
    %3 = vector.load %arg3[%c0, %c0_1] : memref<8x128xf32, #tpu.memory_space<vmem>>, vector<8x128xf32>
    %c0_2 = arith.constant 0 : index
    %c0_3 = arith.constant 0 : index
    %4 = vector.load %arg4[%c0_2, %c0_3] : memref<8x128xf32, #tpu.memory_space<vmem>>, vector<8x128xf32>
    %c0_4 = arith.constant 0 : index
    %c0_5 = arith.constant 0 : index
    %5 = vector.load %arg5[%c0_4, %c0_5] : memref<128x128xf32, #tpu.memory_space<vmem>>, vector<128x128xf32>
    %c0_6 = arith.constant 0 : index
    %c0_7 = arith.constant 0 : index
    %6 = vector.load %arg6[%c0_6, %c0_7] : memref<128x128xf32, #tpu.memory_space<vmem>>, vector<128x128xf32>
    %c0_8 = arith.constant 0 : index
    %c0_9 = arith.constant 0 : index
    %7 = vector.load %arg11[%c0_8, %c0_9] : memref<8x128xf32, #tpu.memory_space<vmem>>, vector<8x128xf32>
    %cst = arith.constant dense<0.000000e+00> : vector<8x128xf32>
    %8 = tpu.matmul %3, %5, %cst {dimension_numbers = #tpu.dot_dimension_numbers<[1], [1], [0], [0], [0, 0, 1, 0], [], []>} : vector<8x128xf32>, vector<128x128xf32>, vector<8x128xf32> -> vector<8x128xf32>
    %cst_10 = arith.constant dense<0.000000e+00> : vector<8x128xf32>
    %9 = tpu.matmul %4, %6, %cst_10 {dimension_numbers = #tpu.dot_dimension_numbers<[1], [1], [0], [0], [0, 0, 1, 0], [], []>} : vector<8x128xf32>, vector<128x128xf32>, vector<8x128xf32> -> vector<8x128xf32>
    %10 = arith.subf %8, %9 : vector<8x128xf32>
    %11 = arith.addf %7, %10 : vector<8x128xf32>
    %c0_11 = arith.constant 0 : index
    %c0_12 = arith.constant 0 : index
    %12 = vector.load %arg11[%c0_11, %c0_12] : memref<8x128xf32, #tpu.memory_space<vmem>>, vector<8x128xf32>
    tpu.vector_store %arg11[%c0_11, %c0_12], %11 {strides = array<i32>} : memref<8x128xf32, #tpu.memory_space<vmem>>, vector<8x128xf32>,
    %c0_13 = arith.constant 0 : index
    %c0_14 = arith.constant 0 : index
    %13 = vector.load %arg12[%c0_13, %c0_14] : memref<8x128xf32, #tpu.memory_space<vmem>>, vector<8x128xf32>
    %cst_15 = arith.constant dense<0.000000e+00> : vector<8x128xf32>
    %14 = tpu.matmul %3, %6, %cst_15 {dimension_numbers = #tpu.dot_dimension_numbers<[1], [1], [0], [0], [0, 0, 1, 0], [], []>} : vector<8x128xf32>, vector<128x128xf32>, vector<8x128xf32> -> vector<8x128xf32>
    %cst_16 = arith.constant dense<0.000000e+00> : vector<8x128xf32>
    %15 = tpu.matmul %4, %5, %cst_16 {dimension_numbers = #tpu.dot_dimension_numbers<[1], [1], [0], [0], [0, 0, 1, 0], [], []>} : vector<8x128xf32>, vector<128x128xf32>, vector<8x128xf32> -> vector<8x128xf32>
    %16 = arith.addf %14, %15 : vector<8x128xf32>
    %17 = arith.addf %13, %16 : vector<8x128xf32>
    %c0_17 = arith.constant 0 : index
    %c0_18 = arith.constant 0 : index
    %18 = vector.load %arg12[%c0_17, %c0_18] : memref<8x128xf32, #tpu.memory_space<vmem>>, vector<8x128xf32>
    tpu.vector_store %arg12[%c0_17, %c0_18], %17 {strides = array<i32>} : memref<8x128xf32, #tpu.memory_space<vmem>>, vector<8x128xf32>,
    %c0_i32_19 = arith.constant 0 : i32
    %19 = arith.cmpi eq, %arg2, %c0_i32_19 : i32
    %20 = arith.extui %19 : i1 to i32
    %c0_i32_20 = arith.constant 0 : i32
    %21 = arith.cmpi ne, %20, %c0_i32_20 : i32
    scf.if %21 {
      %c0_21 = arith.constant 0 : index
      %c0_22 = arith.constant 0 : index
      %22 = vector.load %arg11[%c0_21, %c0_22] : memref<8x128xf32, #tpu.memory_space<vmem>>, vector<8x128xf32>
      %c0_23 = arith.constant 0 : index
      %c0_24 = arith.constant 0 : index
      %23 = vector.load %arg7[%c0_23, %c0_24] : memref<1x128xf32, #tpu.memory_space<vmem>>, vector<1x128xf32>
      %24 = vector.broadcast %23 : vector<1x128xf32> to vector<8x128xf32>
      %25 = arith.addf %22, %24 : vector<8x128xf32>
      %c0_25 = arith.constant 0 : index
      %c0_26 = arith.constant 0 : index
      %26 = vector.load %arg9[%c0_25, %c0_26] : memref<8x128xf32, #tpu.memory_space<vmem>>, vector<8x128xf32>
      tpu.vector_store %arg9[%c0_25, %c0_26], %25 {strides = array<i32>} : memref<8x128xf32, #tpu.memory_space<vmem>>, vector<8x128xf32>,
      %c0_27 = arith.constant 0 : index
      %c0_28 = arith.constant 0 : index
      %27 = vector.load %arg12[%c0_27, %c0_28] : memref<8x128xf32, #tpu.memory_space<vmem>>, vector<8x128xf32>
      %c0_29 = arith.constant 0 : index
      %c0_30 = arith.constant 0 : index
      %28 = vector.load %arg8[%c0_29, %c0_30] : memref<1x128xf32, #tpu.memory_space<vmem>>, vector<1x128xf32>
      %29 = vector.broadcast %28 : vector<1x128xf32> to vector<8x128xf32>
      %30 = arith.addf %27, %29 : vector<8x128xf32>
      %c0_31 = arith.constant 0 : index
      %c0_32 = arith.constant 0 : index
      %31 = vector.load %arg10[%c0_31, %c0_32] : memref<8x128xf32, #tpu.memory_space<vmem>>, vector<8x128xf32>
      tpu.vector_store %arg10[%c0_31, %c0_32], %30 {strides = array<i32>} : memref<8x128xf32, #tpu.memory_space<vmem>>, vector<8x128xf32>,
    } else {
    }
    return
  }
  func.func @transform_0(%arg0: i32, %arg1: i32, %arg2: i32) -> (i32, i32) {
    %c0_i32 = arith.constant 0 : i32
    return %arg0, %arg2 : i32, i32
  }
  func.func @transform_1(%arg0: i32, %arg1: i32, %arg2: i32) -> (i32, i32) {
    %c0_i32 = arith.constant 0 : i32
    return %arg0, %arg2 : i32, i32
  }
  func.func @transform_2(%arg0: i32, %arg1: i32, %arg2: i32) -> (i32, i32) {
    %c0_i32 = arith.constant 0 : i32
    return %arg1, %arg2 : i32, i32
  }
  func.func @transform_3(%arg0: i32, %arg1: i32, %arg2: i32) -> (i32, i32) {
    %c0_i32 = arith.constant 0 : i32
    return %arg1, %arg2 : i32, i32
  }
  func.func @transform_4(%arg0: i32, %arg1: i32, %arg2: i32) -> (i32, i32) {
    %c0_i32 = arith.constant 0 : i32
    %c0_i32_0 = arith.constant 0 : i32
    return %c0_i32, %arg1 : i32, i32
  }
  func.func @transform_5(%arg0: i32, %arg1: i32, %arg2: i32) -> (i32, i32) {
    %c0_i32 = arith.constant 0 : i32
    %c0_i32_0 = arith.constant 0 : i32
    return %c0_i32, %arg1 : i32, i32
  }
  func.func @transform_6(%arg0: i32, %arg1: i32, %arg2: i32) -> (i32, i32) {
    %c0_i32 = arith.constant 0 : i32
    return %arg0, %arg1 : i32, i32
  }
  func.func @transform_7(%arg0: i32, %arg1: i32, %arg2: i32) -> (i32, i32) {
    %c0_i32 = arith.constant 0 : i32
    return %arg0, %arg1 : i32, i32
  }
}

</mosaic_0001>

<llo_original>
// kernel: tpu_custom_call.1
$region0: #{tpu_custom_call.1}
  #allocation0 [shape = 'u32[]', space=smem, size = 0x4, offset = 0x4, fixed_abs, tag = 'smem constant byte address 0x4 - core index']
  #allocation1 [shape = 'u32[144,128]{1,0:T(1,128)}', space=vmem, size = 0x12000, scoped, tag = 'internal scratch']
  #allocation2 [shape = 'f32[8,128]{1,0:T(8,128)}', space=vmem, size = 0x1000, scoped, tag = 'scratch operand']
  #allocation3 [shape = 'f32[8,128]{1,0:T(8,128)}', space=vmem, size = 0x1000, scoped, tag = 'scratch operand']
  %s0 = inlined_call_operand.hbm [shape: f32[8,128], index: 0, kind: input, shape index: {}]
  %s1 = inlined_call_operand.hbm [shape: f32[8,128], index: 1, kind: input, shape index: {}]
  %s2 = inlined_call_operand.hbm [shape: f32[128,128], index: 2, kind: input, shape index: {}]
  %s3 = inlined_call_operand.hbm [shape: f32[128,128], index: 3, kind: input, shape index: {}]
  %s4 = inlined_call_operand.vmem [shape: f32[1,128], index: 4, kind: input, shape index: {}]
  %s5 = inlined_call_operand.vmem [shape: f32[1,128], index: 5, kind: input, shape index: {}]
  %s6 = inlined_call_operand.hbm [shape: f32[8,128], index: 6, kind: output, shape index: {0}]
  %s7 = inlined_call_operand.hbm [shape: f32[8,128], index: 7, kind: output, shape index: {1}]
  %8 = xla_tuple %s6, %s7
  %s9 = sld [smem:[#allocation0]]
  $region66: #{tpu_custom_call.1} parent=0
    _
  %s11 = ssub.s32 1, %s9
  %s12 = scalar_select 0, %s11, %s9
  $region1: #{tpu_custom_call.1} parent=0
    #allocation4 [shape = 'u8[4096]{0}', space=vmem, size = 0x1000, scoped, tag = 'input window, operand 0, single buffered']
    #allocation5 [shape = 's32[1]{0}', space=sflag, size = 0x4, scoped, tag = 'scoped memory for tpu_custom_call.1']
    #allocation6 [shape = 's32[1]{0}', space=sflag, size = 0x4, scoped, tag = 'scoped memory for tpu_custom_call.1']
    #allocation7 [shape = 'u8[4096]{0}', space=vmem, size = 0x1000, scoped, tag = 'input window, operand 1, single buffered']
    #allocation8 [shape = 's32[1]{0}', space=sflag, size = 0x4, scoped, tag = 'scoped memory for tpu_custom_call.1']
    #allocation9 [shape = 'u8[65536]{0}', space=vmem, size = 0x10000, scoped, tag = 'input window, operand 2, single buffered']
    #allocation10 [shape = 'u8[65536]{0}', space=vmem, size = 0x10000, scoped, tag = 'input window, operand 3, single buffered']
    #allocation11 [shape = 's32[1]{0}', space=sflag, size = 0x4, scoped, tag = 'scoped memory for tpu_custom_call.1']
    #allocation12 [shape = 'u8[4096]{0}', space=vmem, size = 0x1000, scoped, tag = 'output window, operand 0, single buffered']
    #allocation13 [shape = 'u8[4096]{0}', space=vmem, size = 0x1000, scoped, tag = 'output window, operand 1, single buffered']
    #allocation14 [shape = 's32[1]{0}', space=sflag, size = 0x4, scoped, tag = 'scoped memory for tpu_custom_call.1']
    %13 = vsyncpa [#allocation5], 0
    %14 = vsyncpa [#allocation8], 0
    %15 = vsyncpa [#allocation11], 0
    %16 = vsyncpa [#allocation6], 0
    %17 = vsyncpa [#allocation14], 0
    // Predicated region
    $region2: #{tpu_custom_call.1} parent=1 // pred_check
      _
    $region3: #{tpu_custom_call.1} parent=1 // pred_check_branch
      %19 = sbr.rel (0) target = $region5
    $region4: #{tpu_custom_call.1} parent=1 // pred_region
      %s21 = ssub.s32 128, 128
      %22 = vsyncadd [#allocation5], %s21
      %s24 = sshll.u32 [#allocation4], 4
      %s25 = int_to_ptr.vmem [resolvable:$true] %s24
      %27 = dma.hbm_to_vmem [thread:$0]  %s0, 128, %s25, [#allocation5]
    $region5: #{tpu_custom_call.1} parent=1 // pred_fallthru
      _
    // Predicated region
    $region6: #{tpu_custom_call.1} parent=1 // pred_check
      _
    $region7: #{tpu_custom_call.1} parent=1 // pred_check_branch
      %29 = sbr.rel (0) target = $region9
    $region8: #{tpu_custom_call.1} parent=1 // pred_region
      %s31 = ssub.s32 128, 128
      %32 = vsyncadd [#allocation8], %s31
      %s34 = sshll.u32 [#allocation7], 4
      %s35 = int_to_ptr.vmem [resolvable:$true] %s34
      %37 = dma.hbm_to_vmem [thread:$0]  %s1, 128, %s35, [#allocation8]
    $region9: #{tpu_custom_call.1} parent=1 // pred_fallthru
      _
    // Predicated region
    $region10: #{tpu_custom_call.1} parent=1 // pred_check
      _
    $region11: #{tpu_custom_call.1} parent=1 // pred_check_branch
      %39 = sbr.rel (0) target = $region13
    $region12: #{tpu_custom_call.1} parent=1 // pred_region
      %s41 = ssub.s32 2048, 2048
      %42 = vsyncadd [#allocation8], %s41
      %s43 = sshll.u32 [#allocation9], 4
      %s44 = int_to_ptr.vmem [resolvable:$true] %s43
      %49 = dma.hbm_to_vmem [thread:$0]  %s2, 2048, %s44, [#allocation8], 128, 128, 8
    $region13: #{tpu_custom_call.1} parent=1 // pred_fallthru
      _
    // Predicated region
    $region14: #{tpu_custom_call.1} parent=1 // pred_check
      _
    $region15: #{tpu_custom_call.1} parent=1 // pred_check_branch
      %51 = sbr.rel (0) target = $region17
    $region16: #{tpu_custom_call.1} parent=1 // pred_region
      %s53 = ssub.s32 2048, 2048
      %54 = vsyncadd [#allocation11], %s53
      %s55 = sshll.u32 [#allocation10], 4
      %s56 = int_to_ptr.vmem [resolvable:$true] %s55
      %61 = dma.hbm_to_vmem [thread:$0]  %s3, 2048, %s56, [#allocation11], 128, 128, 8
    $region17: #{tpu_custom_call.1} parent=1 // pred_fallthru
      _
    // Predicated region
    $region18: #{tpu_custom_call.1} parent=1 // pred_check
      _
    $region19: #{tpu_custom_call.1} parent=1 // pred_check_branch
      %63 = sbr.rel (0) target = $region21
    $region20: #{tpu_custom_call.1} parent=1 // pred_region
      _
    $region21: #{tpu_custom_call.1} parent=1 // pred_fallthru
      _
    // Predicated region
    $region22: #{tpu_custom_call.1} parent=1 // pred_check
      _
    $region23: #{tpu_custom_call.1} parent=1 // pred_check_branch
      %65 = sbr.rel (0) target = $region25
    $region24: #{tpu_custom_call.1} parent=1 // pred_region
      _
    $region25: #{tpu_custom_call.1} parent=1 // pred_fallthru
      _
    // Predicated region
    $region26: #{tpu_custom_call.1} parent=1 // pred_check
      _
    $region27: #{tpu_custom_call.1} parent=1 // pred_check_branch
      %67 = sbr.rel (0) target = $region29
    $region28: #{tpu_custom_call.1} parent=1 // pred_region
      %68 = dma.done [#allocation5], 128
    $region29: #{tpu_custom_call.1} parent=1 // pred_fallthru
      _
    // Predicated region
    $region30: #{tpu_custom_call.1} parent=1 // pred_check
      _
    $region31: #{tpu_custom_call.1} parent=1 // pred_check_branch
      %70 = sbr.rel (0) target = $region33
    $region32: #{tpu_custom_call.1} parent=1 // pred_region
      %71 = dma.done [#allocation8], 128
    $region33: #{tpu_custom_call.1} parent=1 // pred_fallthru
      _
    // Predicated region
    $region34: #{tpu_custom_call.1} parent=1 // pred_check
      _
    $region35: #{tpu_custom_call.1} parent=1 // pred_check_branch
      %73 = sbr.rel (0) target = $region37
    $region36: #{tpu_custom_call.1} parent=1 // pred_region
      %74 = dma.done [#allocation8], 2048
    $region37: #{tpu_custom_call.1} parent=1 // pred_fallthru
      _
    // Predicated region
    $region38: #{tpu_custom_call.1} parent=1 // pred_check
      _
    $region39: #{tpu_custom_call.1} parent=1 // pred_check_branch
      %76 = sbr.rel (0) target = $region41
    $region40: #{tpu_custom_call.1} parent=1 // pred_region
      %77 = dma.done [#allocation11], 2048
    $region41: #{tpu_custom_call.1} parent=1 // pred_fallthru
      _
    %p78 = scmp.eq.s32.totalorder 0, 0
    // Predicated region
    $region42: #{tpu_custom_call.1} parent=1 // pred_check
      %p79 = pneg %p78
    $region43: #{tpu_custom_call.1} parent=1 // pred_check_branch
      %81 = sbr.rel (%p79) target = $region45
    $region44: #{tpu_custom_call.1} parent=1 // pred_region
      %82 = vst [vmem:[#allocation2] sm:$0xff] 0.0
      %83 = vst [vmem:[#allocation3] sm:$0xff] 0.0
    $region45: #{tpu_custom_call.1} parent=1 // pred_fallthru
      _
    %v84 = vld [vmem:[#allocation4] sm:$0xff]
    %v85 = vld [vmem:[#allocation7] sm:$0xff]
    %v86 = vld [vmem:[#allocation9] sm:$0xff]
    %v87 = vld [vmem:[#allocation9 + $0x8] sm:$0xff]
    %v88 = vld [vmem:[#allocation9 + $0x10] sm:$0xff]
    %v89 = vld [vmem:[#allocation9 + $0x18] sm:$0xff]
    %v90 = vld [vmem:[#allocation9 + $0x20] sm:$0xff]
    %v91 = vld [vmem:[#allocation9 + $0x28] sm:$0xff]
    %v92 = vld [vmem:[#allocation9 + $0x30] sm:$0xff]
    %v93 = vld [vmem:[#allocation9 + $0x38] sm:$0xff]
    %v94 = vld [vmem:[#allocation9 + $0x40] sm:$0xff]
    %v95 = vld [vmem:[#allocation9 + $0x48] sm:$0xff]
    %v96 = vld [vmem:[#allocation9 + $0x50] sm:$0xff]
    %v97 = vld [vmem:[#allocation9 + $0x58] sm:$0xff]
    %v98 = vld [vmem:[#allocation9 + $0x60] sm:$0xff]
    %v99 = vld [vmem:[#allocation9 + $0x68] sm:$0xff]
    %v100 = vld [vmem:[#allocation9 + $0x70] sm:$0xff]
    %v101 = vld [vmem:[#allocation9 + $0x78] sm:$0xff]
    %v102 = vld [vmem:[#allocation10] sm:$0xff]
    %v103 = vld [vmem:[#allocation10 + $0x8] sm:$0xff]
    %v104 = vld [vmem:[#allocation10 + $0x10] sm:$0xff]
    %v105 = vld [vmem:[#allocation10 + $0x18] sm:$0xff]
    %v106 = vld [vmem:[#allocation10 + $0x20] sm:$0xff]
    %v107 = vld [vmem:[#allocation10 + $0x28] sm:$0xff]
    %v108 = vld [vmem:[#allocation10 + $0x30] sm:$0xff]
    %v109 = vld [vmem:[#allocation10 + $0x38] sm:$0xff]
    %v110 = vld [vmem:[#allocation10 + $0x40] sm:$0xff]
    %v111 = vld [vmem:[#allocation10 + $0x48] sm:$0xff]
    %v112 = vld [vmem:[#allocation10 + $0x50] sm:$0xff]
    %v113 = vld [vmem:[#allocation10 + $0x58] sm:$0xff]
    %v114 = vld [vmem:[#allocation10 + $0x60] sm:$0xff]
    %v115 = vld [vmem:[#allocation10 + $0x68] sm:$0xff]
    %v116 = vld [vmem:[#allocation10 + $0x70] sm:$0xff]
    %v117 = vld [vmem:[#allocation10 + $0x78] sm:$0xff]
    %v118 = vld [vmem:[#allocation2] sm:$0xff]
    %119 = vmatprep.subr.mxu0 0.0
    %120 = vmatpush1.xpose.msra.mxu0 %v86
    %121 = vmatprep.subr.mxu0 0.0
    %122 = vmatpush1.xpose.msra.mxu0 %v87
    %123 = vmatprep.subr.mxu0 0.0
    %124 = vmatpush1.xpose.msra.mxu0 %v88
    %125 = vmatprep.subr.mxu0 0.0
    %126 = vmatpush1.xpose.msra.mxu0 %v89
    %127 = vmatprep.subr.mxu0 0.0
    %128 = vmatpush1.xpose.msra.mxu0 %v90
    %129 = vmatprep.subr.mxu0 0.0
    %130 = vmatpush1.xpose.msra.mxu0 %v91
    %131 = vmatprep.subr.mxu0 0.0
    %132 = vmatpush1.xpose.msra.mxu0 %v92
    %133 = vmatprep.subr.mxu0 0.0
    %134 = vmatpush1.xpose.msra.mxu0 %v93
    %135 = vmatprep.subr.mxu0 0.0
    %136 = vmatpush1.xpose.msra.mxu0 %v94
    %137 = vmatprep.subr.mxu0 0.0
    %138 = vmatpush1.xpose.msra.mxu0 %v95
    %139 = vmatprep.subr.mxu0 0.0
    %140 = vmatpush1.xpose.msra.mxu0 %v96
    %141 = vmatprep.subr.mxu0 0.0
    %142 = vmatpush1.xpose.msra.mxu0 %v97
    %143 = vmatprep.subr.mxu0 0.0
    %144 = vmatpush1.xpose.msra.mxu0 %v98
    %145 = vmatprep.subr.mxu0 0.0
    %146 = vmatpush1.xpose.msra.mxu0 %v99
    %147 = vmatprep.subr.mxu0 0.0
    %148 = vmatpush1.xpose.msra.mxu0 %v100
    %149 = vmatprep.subr.mxu0 0.0
    %150 = vmatpush1.xpose.msra.mxu0 %v101
    %151 = vmatprep.subr.mxu0 0.0
    %152 = vmatpush1.xpose.msra.mxu0 0.0
    %153 = vmatprep.subr.mxu0 0.0
    %154 = vmatpush1.xpose.msra.mxu0 0.0
    %155 = vmatprep.subr.mxu0 0.0
    %156 = vmatpush1.xpose.msra.mxu0 0.0
    %157 = vmatprep.subr.mxu0 0.0
    %158 = vmatpush1.xpose.msra.mxu0 0.0
    %159 = vmatprep.subr.mxu0 0.0
    %160 = vmatpush1.xpose.msra.mxu0 0.0
    %161 = vmatprep.subr.mxu0 0.0
    %162 = vmatpush1.xpose.msra.mxu0 0.0
    %163 = vmatprep.subr.mxu0 0.0
    %164 = vmatpush1.xpose.msra.mxu0 0.0
    %165 = vmatprep.subr.mxu0 0.0
    %166 = vmatpush1.xpose.msra.mxu0 0.0
    %167 = vmatprep.subr.mxu0 0.0
    %168 = vmatpush1.xpose.msra.mxu0 0.0
    %169 = vmatprep.subr.mxu0 0.0
    %170 = vmatpush1.xpose.msra.mxu0 0.0
    %171 = vmatprep.subr.mxu0 0.0
    %172 = vmatpush1.xpose.msra.mxu0 0.0
    %173 = vmatprep.subr.mxu0 0.0
    %174 = vmatpush1.xpose.msra.mxu0 0.0
    %175 = vmatprep.subr.mxu0 0.0
    %176 = vmatpush1.xpose.msra.mxu0 0.0
    %177 = vmatprep.subr.mxu0 0.0
    %178 = vmatpush1.xpose.msra.mxu0 0.0
    %179 = vmatprep.subr.mxu0 0.0
    %180 = vmatpush1.xpose.msra.mxu0 0.0
    %181 = vmatprep.subr.mxu0 0.0
    %182 = vmatpush1.xpose.msra.mxu0 0.0
    %183 = vmatprep.mubr.f32.mxu0 0.0
    %184 = vmatmul.mubr.f32.gmra.mrb[0].mxu0 %v84
    %v185 = vpop.f32.mrb[0].mxu0
    %v186 = vadd.f32 0.0, %v185
    %v187 = vpop.f32.mrb[0].mxu0
    %188 = vdwg.mxu0
    %189 = vmatprep.subr.mxu0 0.0
    %190 = vmatpush1.xpose.msra.mxu0 %v102
    %191 = vmatprep.subr.mxu0 0.0
    %192 = vmatpush1.xpose.msra.mxu0 %v103
    %193 = vmatprep.subr.mxu0 0.0
    %194 = vmatpush1.xpose.msra.mxu0 %v104
    %195 = vmatprep.subr.mxu0 0.0
    %196 = vmatpush1.xpose.msra.mxu0 %v105
    %197 = vmatprep.subr.mxu0 0.0
    %198 = vmatpush1.xpose.msra.mxu0 %v106
    %199 = vmatprep.subr.mxu0 0.0
    %200 = vmatpush1.xpose.msra.mxu0 %v107
    %201 = vmatprep.subr.mxu0 0.0
    %202 = vmatpush1.xpose.msra.mxu0 %v108
    %203 = vmatprep.subr.mxu0 0.0
    %204 = vmatpush1.xpose.msra.mxu0 %v109
    %205 = vmatprep.subr.mxu0 0.0
    %206 = vmatpush1.xpose.msra.mxu0 %v110
    %207 = vmatprep.subr.mxu0 0.0
    %208 = vmatpush1.xpose.msra.mxu0 %v111
    %209 = vmatprep.subr.mxu0 0.0
    %210 = vmatpush1.xpose.msra.mxu0 %v112
    %211 = vmatprep.subr.mxu0 0.0
    %212 = vmatpush1.xpose.msra.mxu0 %v113
    %213 = vmatprep.subr.mxu0 0.0
    %214 = vmatpush1.xpose.msra.mxu0 %v114
    %215 = vmatprep.subr.mxu0 0.0
    %216 = vmatpush1.xpose.msra.mxu0 %v115
    %217 = vmatprep.subr.mxu0 0.0
    %218 = vmatpush1.xpose.msra.mxu0 %v116
    %219 = vmatprep.subr.mxu0 0.0
    %220 = vmatpush1.xpose.msra.mxu0 %v117
    %221 = vmatprep.subr.mxu0 0.0
    %222 = vmatpush1.xpose.msra.mxu0 0.0
    %223 = vmatprep.subr.mxu0 0.0
    %224 = vmatpush1.xpose.msra.mxu0 0.0
    %225 = vmatprep.subr.mxu0 0.0
    %226 = vmatpush1.xpose.msra.mxu0 0.0
    %227 = vmatprep.subr.mxu0 0.0
    %228 = vmatpush1.xpose.msra.mxu0 0.0
    %229 = vmatprep.subr.mxu0 0.0
    %230 = vmatpush1.xpose.msra.mxu0 0.0
    %231 = vmatprep.subr.mxu0 0.0
    %232 = vmatpush1.xpose.msra.mxu0 0.0
    %233 = vmatprep.subr.mxu0 0.0
    %234 = vmatpush1.xpose.msra.mxu0 0.0
    %235 = vmatprep.subr.mxu0 0.0
    %236 = vmatpush1.xpose.msra.mxu0 0.0
    %237 = vmatprep.subr.mxu0 0.0
    %238 = vmatpush1.xpose.msra.mxu0 0.0
    %239 = vmatprep.subr.mxu0 0.0
    %240 = vmatpush1.xpose.msra.mxu0 0.0
    %241 = vmatprep.subr.mxu0 0.0
    %242 = vmatpush1.xpose.msra.mxu0 0.0
    %243 = vmatprep.subr.mxu0 0.0
    %244 = vmatpush1.xpose.msra.mxu0 0.0
    %245 = vmatprep.subr.mxu0 0.0
    %246 = vmatpush1.xpose.msra.mxu0 0.0
    %247 = vmatprep.subr.mxu0 0.0
    %248 = vmatpush1.xpose.msra.mxu0 0.0
    %249 = vmatprep.subr.mxu0 0.0
    %250 = vmatpush1.xpose.msra.mxu0 0.0
    %251 = vmatprep.subr.mxu0 0.0
    %252 = vmatpush1.xpose.msra.mxu0 0.0
    %253 = vmatprep.mubr.f32.mxu0 0.0
    %254 = vmatmul.mubr.f32.gmra.mrb[0].mxu0 %v85
    %v255 = vpop.f32.mrb[0].mxu0
    %v256 = vadd.f32 0.0, %v255
    %v257 = vpop.f32.mrb[0].mxu0
    %258 = vdwg.mxu0
    %v259 = vsub.f32 %v186, %v256
    %v260 = vadd.f32 %v118, %v259
    %261 = vst [vmem:[#allocation2] sm:$0xff] %v260
    %v262 = vld [vmem:[#allocation3] sm:$0xff]
    %263 = vmatprep.subr.mxu0 0.0
    %264 = vmatpush1.xpose.msra.mxu0 %v86
    %265 = vmatprep.subr.mxu0 0.0
    %266 = vmatpush1.xpose.msra.mxu0 %v87
    %267 = vmatprep.subr.mxu0 0.0
    %268 = vmatpush1.xpose.msra.mxu0 %v88
    %269 = vmatprep.subr.mxu0 0.0
    %270 = vmatpush1.xpose.msra.mxu0 %v89
    %271 = vmatprep.subr.mxu0 0.0
    %272 = vmatpush1.xpose.msra.mxu0 %v90
    %273 = vmatprep.subr.mxu0 0.0
    %274 = vmatpush1.xpose.msra.mxu0 %v91
    %275 = vmatprep.subr.mxu0 0.0
    %276 = vmatpush1.xpose.msra.mxu0 %v92
    %277 = vmatprep.subr.mxu0 0.0
    %278 = vmatpush1.xpose.msra.mxu0 %v93
    %279 = vmatprep.subr.mxu0 0.0
    %280 = vmatpush1.xpose.msra.mxu0 %v94
    %281 = vmatprep.subr.mxu0 0.0
    %282 = vmatpush1.xpose.msra.mxu0 %v95
    %283 = vmatprep.subr.mxu0 0.0
    %284 = vmatpush1.xpose.msra.mxu0 %v96
    %285 = vmatprep.subr.mxu0 0.0
    %286 = vmatpush1.xpose.msra.mxu0 %v97
    %287 = vmatprep.subr.mxu0 0.0
    %288 = vmatpush1.xpose.msra.mxu0 %v98
    %289 = vmatprep.subr.mxu0 0.0
    %290 = vmatpush1.xpose.msra.mxu0 %v99
    %291 = vmatprep.subr.mxu0 0.0
    %292 = vmatpush1.xpose.msra.mxu0 %v100
    %293 = vmatprep.subr.mxu0 0.0
    %294 = vmatpush1.xpose.msra.mxu0 %v101
    %295 = vmatprep.subr.mxu0 0.0
    %296 = vmatpush1.xpose.msra.mxu0 0.0
    %297 = vmatprep.subr.mxu0 0.0
    %298 = vmatpush1.xpose.msra.mxu0 0.0
    %299 = vmatprep.subr.mxu0 0.0
    %300 = vmatpush1.xpose.msra.mxu0 0.0
    %301 = vmatprep.subr.mxu0 0.0
    %302 = vmatpush1.xpose.msra.mxu0 0.0
    %303 = vmatprep.subr.mxu0 0.0
    %304 = vmatpush1.xpose.msra.mxu0 0.0
    %305 = vmatprep.subr.mxu0 0.0
    %306 = vmatpush1.xpose.msra.mxu0 0.0
    %307 = vmatprep.subr.mxu0 0.0
    %308 = vmatpush1.xpose.msra.mxu0 0.0
    %309 = vmatprep.subr.mxu0 0.0
    %310 = vmatpush1.xpose.msra.mxu0 0.0
    %311 = vmatprep.subr.mxu0 0.0
    %312 = vmatpush1.xpose.msra.mxu0 0.0
    %313 = vmatprep.subr.mxu0 0.0
    %314 = vmatpush1.xpose.msra.mxu0 0.0
    %315 = vmatprep.subr.mxu0 0.0
    %316 = vmatpush1.xpose.msra.mxu0 0.0
    %317 = vmatprep.subr.mxu0 0.0
    %318 = vmatpush1.xpose.msra.mxu0 0.0
    %319 = vmatprep.subr.mxu0 0.0
    %320 = vmatpush1.xpose.msra.mxu0 0.0
    %321 = vmatprep.subr.mxu0 0.0
    %322 = vmatpush1.xpose.msra.mxu0 0.0
    %323 = vmatprep.subr.mxu0 0.0
    %324 = vmatpush1.xpose.msra.mxu0 0.0
    %325 = vmatprep.subr.mxu0 0.0
    %326 = vmatpush1.xpose.msra.mxu0 0.0
    %327 = vmatprep.mubr.f32.mxu0 0.0
    %328 = vmatmul.mubr.f32.gmra.mrb[0].mxu0 %v85
    %v329 = vpop.f32.mrb[0].mxu0
    %v330 = vadd.f32 0.0, %v329
    %v331 = vpop.f32.mrb[0].mxu0
    %332 = vdwg.mxu0
    %333 = vmatprep.subr.mxu0 0.0
    %334 = vmatpush1.xpose.msra.mxu0 %v102
    %335 = vmatprep.subr.mxu0 0.0
    %336 = vmatpush1.xpose.msra.mxu0 %v103
    %337 = vmatprep.subr.mxu0 0.0
    %338 = vmatpush1.xpose.msra.mxu0 %v104
    %339 = vmatprep.subr.mxu0 0.0
    %340 = vmatpush1.xpose.msra.mxu0 %v105
    %341 = vmatprep.subr.mxu0 0.0
    %342 = vmatpush1.xpose.msra.mxu0 %v106
    %343 = vmatprep.subr.mxu0 0.0
    %344 = vmatpush1.xpose.msra.mxu0 %v107
    %345 = vmatprep.subr.mxu0 0.0
    %346 = vmatpush1.xpose.msra.mxu0 %v108
    %347 = vmatprep.subr.mxu0 0.0
    %348 = vmatpush1.xpose.msra.mxu0 %v109
    %349 = vmatprep.subr.mxu0 0.0
    %350 = vmatpush1.xpose.msra.mxu0 %v110
    %351 = vmatprep.subr.mxu0 0.0
    %352 = vmatpush1.xpose.msra.mxu0 %v111
    %353 = vmatprep.subr.mxu0 0.0
    %354 = vmatpush1.xpose.msra.mxu0 %v112
    %355 = vmatprep.subr.mxu0 0.0
    %356 = vmatpush1.xpose.msra.mxu0 %v113
    %357 = vmatprep.subr.mxu0 0.0
    %358 = vmatpush1.xpose.msra.mxu0 %v114
    %359 = vmatprep.subr.mxu0 0.0
    %360 = vmatpush1.xpose.msra.mxu0 %v115
    %361 = vmatprep.subr.mxu0 0.0
    %362 = vmatpush1.xpose.msra.mxu0 %v116
    %363 = vmatprep.subr.mxu0 0.0
    %364 = vmatpush1.xpose.msra.mxu0 %v117
    %365 = vmatprep.subr.mxu0 0.0
    %366 = vmatpush1.xpose.msra.mxu0 0.0
    %367 = vmatprep.subr.mxu0 0.0
    %368 = vmatpush1.xpose.msra.mxu0 0.0
    %369 = vmatprep.subr.mxu0 0.0
    %370 = vmatpush1.xpose.msra.mxu0 0.0
    %371 = vmatprep.subr.mxu0 0.0
    %372 = vmatpush1.xpose.msra.mxu0 0.0
    %373 = vmatprep.subr.mxu0 0.0
    %374 = vmatpush1.xpose.msra.mxu0 0.0
    %375 = vmatprep.subr.mxu0 0.0
    %376 = vmatpush1.xpose.msra.mxu0 0.0
    %377 = vmatprep.subr.mxu0 0.0
    %378 = vmatpush1.xpose.msra.mxu0 0.0
    %379 = vmatprep.subr.mxu0 0.0
    %380 = vmatpush1.xpose.msra.mxu0 0.0
    %381 = vmatprep.subr.mxu0 0.0
    %382 = vmatpush1.xpose.msra.mxu0 0.0
    %383 = vmatprep.subr.mxu0 0.0
    %384 = vmatpush1.xpose.msra.mxu0 0.0
    %385 = vmatprep.subr.mxu0 0.0
    %386 = vmatpush1.xpose.msra.mxu0 0.0
    %387 = vmatprep.subr.mxu0 0.0
    %388 = vmatpush1.xpose.msra.mxu0 0.0
    %389 = vmatprep.subr.mxu0 0.0
    %390 = vmatpush1.xpose.msra.mxu0 0.0
    %391 = vmatprep.subr.mxu0 0.0
    %392 = vmatpush1.xpose.msra.mxu0 0.0
    %393 = vmatprep.subr.mxu0 0.0
    %394 = vmatpush1.xpose.msra.mxu0 0.0
    %395 = vmatprep.subr.mxu0 0.0
    %396 = vmatpush1.xpose.msra.mxu0 0.0
    %397 = vmatprep.mubr.f32.mxu0 0.0
    %398 = vmatmul.mubr.f32.gmra.mrb[0].mxu0 %v84
    %v399 = vpop.f32.mrb[0].mxu0
    %v400 = vadd.f32 %v330, %v399
    %v401 = vpop.f32.mrb[0].mxu0
    %402 = vdwg.mxu0
    %v403 = vadd.f32 %v262, %v400
    %404 = vst [vmem:[#allocation3] sm:$0xff] %v403
    // Predicated region
    $region46: #{tpu_custom_call.1} parent=1 // pred_check
      %p405 = pneg %p78
    $region47: #{tpu_custom_call.1} parent=1 // pred_check_branch
      %407 = sbr.rel (%p405) target = $region49
    $region48: #{tpu_custom_call.1} parent=1 // pred_region
      %v408 = vld [vmem:[#allocation2] sm:$0xff]
      %v409 = vld [vmem:[%s4] sm:$0x1]
      %v411 = vlaneseq
      %v412 = vshrl.u32 %v411, 7
      %v413 = vsub.s32 0, %v412
      %v414 = vrot.slane %v409, %v413
      %v416 = vadd.f32 %v408, %v414
      %417 = vst [vmem:[#allocation12] sm:$0xff] %v416
      %v418 = vld [vmem:[#allocation3] sm:$0xff]
      %v419 = vld [vmem:[%s5] sm:$0x1]
      %v421 = vlaneseq
      %v422 = vshrl.u32 %v421, 7
      %v423 = vsub.s32 0, %v422
      %v424 = vrot.slane %v419, %v423
      %v426 = vadd.f32 %v418, %v424
      %427 = vst [vmem:[#allocation13] sm:$0xff] %v426
    $region49: #{tpu_custom_call.1} parent=1 // pred_fallthru
      _
    // Predicated region
    $region50: #{tpu_custom_call.1} parent=1 // pred_check
      _
    $region51: #{tpu_custom_call.1} parent=1 // pred_check_branch
      %429 = sbr.rel (0) target = $region53
    $region52: #{tpu_custom_call.1} parent=1 // pred_region
      %s431 = ssub.s32 128, 128
      %432 = vsyncadd [#allocation6], %s431
      %s434 = sshll.u32 [#allocation12], 4
      %s435 = int_to_ptr.vmem [resolvable:$true] %s434
      %437 = dma.vmem_to_hbm [thread:$0]  %s435, 128, %s6, [#allocation6]
    $region53: #{tpu_custom_call.1} parent=1 // pred_fallthru
      _
    // Predicated region
    $region54: #{tpu_custom_call.1} parent=1 // pred_check
      _
    $region55: #{tpu_custom_call.1} parent=1 // pred_check_branch
      %439 = sbr.rel (0) target = $region57
    $region56: #{tpu_custom_call.1} parent=1 // pred_region
      %s441 = ssub.s32 128, 128
      %442 = vsyncadd [#allocation14], %s441
      %s444 = sshll.u32 [#allocation13], 4
      %s445 = int_to_ptr.vmem [resolvable:$true] %s444
      %447 = dma.vmem_to_hbm [thread:$0]  %s445, 128, %s7, [#allocation14]
    $region57: #{tpu_custom_call.1} parent=1 // pred_fallthru
      _
    // Predicated region
    $region58: #{tpu_custom_call.1} parent=1 // pred_check
      _
    $region59: #{tpu_custom_call.1} parent=1 // pred_check_branch
      %449 = sbr.rel (0) target = $region61
    $region60: #{tpu_custom_call.1} parent=1 // pred_region
      %450 = dma.done [#allocation6], 128
    $region61: #{tpu_custom_call.1} parent=1 // pred_fallthru
      _
    // Predicated region
    $region62: #{tpu_custom_call.1} parent=1 // pred_check
      _
    $region63: #{tpu_custom_call.1} parent=1 // pred_check_branch
      %452 = sbr.rel (0) target = $region65
    $region64: #{tpu_custom_call.1} parent=1 // pred_region
      %453 = dma.done [#allocation14], 128
    $region65: #{tpu_custom_call.1} parent=1 // pred_fallthru
      _
    %454 = vsyncpa [#allocation5], 1
    %455 = vsyncpa [#allocation8], 1
    %456 = vsyncpa [#allocation11], 1
    %457 = vsyncpa [#allocation6], 1
    %458 = vsyncpa [#allocation14], 1

</llo_original>
